<compile_context>
chip_gen: v6e
topology: v6e:2x2x1
jax: 0.10.0
libtpu: 0.0.40
codegen_flags: <defaults>
</compile_context>

<pallas_src>
import numpy as np
import jax
import jax.numpy as jnp
from jax.experimental import pallas as pl
from jax.experimental.pallas import tpu as pltpu

NEG_SLOPE = 0.2      # GATConv default negative_slope
MASK_VAL = -1e30     # additive mask sentinel (f32)
LANE = 128           # TPU lane width   -> feature padding target (lane-dense stores)
SUBLANE = 8          # TPU sublane width -> node-count padding target


def fused_gat_kernel(idx_ref, x_ref, w1_ref, a1_ref, b1_ref, adj1_ref,
                     w2_ref, a2_ref, b2_ref, adj2_ref, out_ref, h2_ref):
    """Two fused GATConv layers (heads=1, concat=True, dropout=0) + leaf-row gather.

    idx:   (V,)    int32 SMEM  graph-node index of each vocabulary word
    x:     (N, Cp) f32         node features (N padded to 8, Cp padded to 128)
    w*:    (Cp,Cp) bf16        GATConv linear weight (zero padded)
    a*:    (Cp, 2) bf16        [W @ att_dst | W @ att_src]
    b*:    (1, Cp) f32         bias
    adj*:  (N, N)  int8        1 where edge src->dst (j -> i), self loops included
    out:   (V, Cp) f32
    h2:    (N, Cp) f32         VMEM scratch holding the layer-2 node embeddings
    """

    def gat_layer(x_f32, w_ref, a_ref, b_ref, adj_ref):
        x_bf = x_f32.astype(jnp.bfloat16)
        # Feature projection and attention-score projection (MXU, f32 accumulation).
        h = jnp.dot(x_bf, w_ref[...], preferred_element_type=jnp.float32)     # (N, Cp)
        s = jnp.dot(x_bf, a_ref[...], preferred_element_type=jnp.float32)     # (N, 2)
        # e[i, j] = s_dst[i] + s_src[j], built as an MXU rank-2 outer sum:
        #   [s_dst | 1] @ [1 | s_src]^T  (contract the size-2 axis; MXU absorbs the T).
        col = jax.lax.broadcasted_iota(jnp.int32, s.shape, 1)
        lhs = jnp.where(col == 0, s, 1.0)                                      # [s_dst, 1]
        rhs = jnp.where(col == 1, s, 1.0)                                      # [1, s_src]
        e = jax.lax.dot_general(lhs, rhs, (((1,), (1,)), ((), ())),
                                preferred_element_type=jnp.float32)            # (N, N)
        e = jnp.maximum(e, NEG_SLOPE * e)                                      # leaky_relu
        e = jnp.where(adj_ref[...] != 0, e, MASK_VAL)                          # mask non-edges
        e = e - jnp.max(e, axis=1, keepdims=True)                              # softmax over sources
        p = jnp.exp(e)                                                         # keep f32 (v5e-safe EUP)
        denom = jnp.sum(p, axis=1, keepdims=True)
        # Aggregate with UNNORMALIZED probabilities, then normalize the (N, Cp) result.
        o = jnp.dot(p.astype(jnp.bfloat16), h.astype(jnp.bfloat16),
                    preferred_element_type=jnp.float32)
        return o * pl.reciprocal(denom, approx=True) + b_ref[...]

    h1 = gat_layer(x_ref[...], w1_ref, a1_ref, b1_ref, adj1_ref)
    h2_ref[...] = gat_layer(h1, w2_ref, a2_ref, b2_ref, adj2_ref)

    # emb[idx_mapping]: gather the V leaf rows straight out of VMEM (no one-hot matmul).
    def copy_row(v, carry):
        r = idx_ref[v]
        out_ref[pl.ds(v, 1), :] = h2_ref[pl.ds(r, 1), :]
        return carry

    jax.lax.fori_loop(0, out_ref.shape[0], copy_row, 0, unroll=True)


# ------------------------------- wrapper / packing ---------------------------------

def _round_up(x, m):
    return ((x + m - 1) // m) * m


def _pack_gat_params(params, c, c_pad):
    """Zero-pad GATConv params to the 128-lane feature width; fold the attention
    vectors into the weight: a2 = [W@att_dst | W@att_src]  (bf16 MXU operands)."""
    w, att_dst, att_src, bias = params
    a2 = jnp.concatenate([w @ att_dst, w @ att_src], axis=1)                   # (c, 2)
    w_p = jnp.zeros((c_pad, c_pad), jnp.float32).at[:c, :c].set(w)
    a2_p = jnp.zeros((c_pad, 2), jnp.float32).at[:c, :].set(a2)
    b_p = jnp.zeros((1, c_pad), jnp.float32).at[:, :c].set(bias)
    return w_p.astype(jnp.bfloat16), a2_p.astype(jnp.bfloat16), b_p


def _edges_to_adj_int8(edges, n_pad):
    """int8 adjacency: adj[dst, src] = 1 for every edge src->dst, self loops added.
    Pad rows get only a self loop, so their softmax stays finite; pad columns of real
    rows stay 0, so padded nodes never feed real nodes."""
    adj = np.zeros((n_pad, n_pad), dtype=np.int8)
    for dst, src in edges:
        if dst != src:                            # remove_self_loops
            adj[dst, src] = 1
    np.fill_diagonal(adj, 1)                      # add_self_loops
    return jnp.asarray(adj)


def ontology_embedding_forward(embedding, params1, params2, edges1, edges2, idx_mapping):
    n, c = embedding.shape
    n_pad = _round_up(n, SUBLANE)
    c_pad = _round_up(max(c, LANE), LANE)
    v = len(idx_mapping)

    x = jnp.zeros((n_pad, c_pad), jnp.float32).at[:n, :c].set(embedding)
    w1, a1, b1 = _pack_gat_params(params1, c, c_pad)
    w2, a2, b2 = _pack_gat_params(params2, c, c_pad)
    adj1 = _edges_to_adj_int8(edges1, n_pad)
    adj2 = _edges_to_adj_int8(edges2, n_pad)
    idx = jnp.asarray(np.asarray(idx_mapping, dtype=np.int32))

    smem = pl.BlockSpec(memory_space=pltpu.MemorySpace.SMEM)
    vmem = pl.BlockSpec(memory_space=pltpu.MemorySpace.VMEM)
    out = pl.pallas_call(
        fused_gat_kernel,
        out_shape=jax.ShapeDtypeStruct((v, c_pad), jnp.float32),
        in_specs=[smem] + [vmem] * 9,
        out_specs=vmem,
        scratch_shapes=[pltpu.VMEM((n_pad, c_pad), jnp.float32)],
    )(idx, x, w1, a1, b1, adj1, w2, a2, b2, adj2)
    return out[:, :c]     # drop lane padding (kernel-side stores remain lane-dense)


# --------------------- parameter / graph construction (glue) -----------------------

def glorot(key, shape):
    """PyG-style glorot: uniform(-a, a), a = sqrt(6 / (size(-2) + size(-1)))."""
    fan = shape[-2] + shape[-1] if len(shape) >= 2 else shape[-1] + 1
    a = np.sqrt(6.0 / fan)
    return jax.random.uniform(key, shape, minval=-a, maxval=a, dtype=jnp.float32)


def build_synthetic_ontology():
    """Synthetic stand-in for build_tree_func / build_stage_*_edges.

    Tree: 8 leaf words (nodes 0..7), 4 internal parents (8..11), 1 root (12).
    edges1 (stage one): ancestors -> leaves   (messages flow down to leaves)
    edges2 (stage two): children  -> parents  (messages flow up)
    idx_mapping: the leaf node indices, one per vocabulary word.
    Edges stored as (dst, src) pairs.
    """
    num_words = 8
    num_nodes = 13
    parent_of_leaf = [8, 8, 9, 9, 10, 10, 11, 11]
    root = 12
    edges1 = []
    for leaf in range(num_words):
        edges1.append((leaf, parent_of_leaf[leaf]))
        edges1.append((leaf, root))
    edges2 = []
    for leaf in range(num_words):
        edges2.append((parent_of_leaf[leaf], leaf))
    for internal in (8, 9, 10, 11):
        edges2.append((root, internal))
    idx_mapping = list(range(num_words))
    return num_nodes, edges1, edges2, idx_mapping


def make_gat_params(kw, ka, c):
    w = glorot(kw, (c, c))                               # GATConv.weight (in, heads*out)
    att = glorot(ka, (1, 2 * c))                         # GATConv.att (1, heads, 2*out)
    att_dst = att[:, :c].reshape(c, 1)                   # multiplies x_i (target)
    att_src = att[:, c:].reshape(c, 1)                   # multiplies x_j (source)
    bias = jnp.zeros((1, c), dtype=jnp.float32)          # GATConv bias init: zeros
    return (w, att_dst, att_src, bias)


def reference_forward(embedding, params1, params2, edges1, edges2, idx_mapping):
    """Pure-JAX f32 reference (dense-mask softmax) of the two GATConv layers + gather."""
    n = embedding.shape[0]

    def dense_adj(edges):
        a = np.zeros((n, n), dtype=np.float32)
        for dst, src in edges:
            if dst != src:
                a[dst, src] = 1.0
        np.fill_diagonal(a, 1.0)
        return jnp.asarray(a)

    def gat(x, params, adj):
        w, att_dst, att_src, bias = params
        h = x @ w
        e = (h @ att_dst) + (h @ att_src).T
        e = jnp.where(e >= 0, e, NEG_SLOPE * e)
        e = jnp.where(adj > 0, e, -jnp.inf)
        alpha = jax.nn.softmax(e, axis=1)
        return alpha @ h + bias

    h1 = gat(embedding, params1, dense_adj(edges1))
    h2 = gat(h1, params2, dense_adj(edges2))
    return h2[jnp.asarray(idx_mapping)]


if __name__ == "__main__":
    C = 32  # in_channels == heads * out_channels, heads = 1
    num_nodes, edges1, edges2, idx_mapping = build_synthetic_ontology()
    num_words = len(idx_mapping)

    key = jax.random.PRNGKey(0)
    k_emb, k_w1, k_a1, k_w2, k_a2 = jax.random.split(key, 5)

    # nn.Parameter(torch.randn(num_nodes, C)) followed by glorot(embedding) in init_params.
    embedding = glorot(k_emb, (num_nodes, C))
    params1 = make_gat_params(k_w1, k_a1, C)
    params2 = make_gat_params(k_w2, k_a2, C)

    out = ontology_embedding_forward(embedding, params1, params2,
                                     edges1, edges2, idx_mapping)
    out = jax.block_until_ready(out)
    assert out.shape == (num_words, C)
    assert bool(jnp.all(jnp.isfinite(out)))

    ref = reference_forward(embedding, params1, params2, edges1, edges2, idx_mapping)
    err = float(jnp.max(jnp.abs(out - ref)))
    # bf16 MXU operands + approx reciprocal => small divergence from the f32 reference.
    assert err < 6e-2, f"max abs err vs reference: {err}"
    print("KERNEL_OK")
</pallas_src>

<mosaic_0001>
module attributes {stable_mosaic.version = 11 : i64} {
  func.func @fused_gat_kernel(%arg0: memref<8xi32, #tpu.memory_space<smem>>, %arg1: memref<16x128xf32, #tpu.memory_space<vmem>>, %arg2: memref<128x128xbf16, #tpu.memory_space<vmem>>, %arg3: memref<128x2xbf16, #tpu.memory_space<vmem>>, %arg4: memref<1x128xf32, #tpu.memory_space<vmem>>, %arg5: memref<16x16xi8, #tpu.memory_space<vmem>>, %arg6: memref<128x128xbf16, #tpu.memory_space<vmem>>, %arg7: memref<128x2xbf16, #tpu.memory_space<vmem>>, %arg8: memref<1x128xf32, #tpu.memory_space<vmem>>, %arg9: memref<16x16xi8, #tpu.memory_space<vmem>>, %arg10: memref<8x128xf32, #tpu.memory_space<vmem>>, %arg11: memref<16x128xf32, #tpu.memory_space<vmem>>) attributes {dimension_semantics = [], scalar_prefetch = 0 : i64, scratch_operands = 1 : i64, tpu.core_type = #tpu.core_type<tc>} {
    %c0 = arith.constant 0 : index
    %c0_0 = arith.constant 0 : index
    %0 = vector.load %arg1[%c0, %c0_0] : memref<16x128xf32, #tpu.memory_space<vmem>>, vector<16x128xf32>
    %1 = arith.truncf %0 : vector<16x128xf32> to vector<16x128xbf16>
    %c0_1 = arith.constant 0 : index
    %c0_2 = arith.constant 0 : index
    %2 = vector.load %arg2[%c0_1, %c0_2] : memref<128x128xbf16, #tpu.memory_space<vmem>>, vector<128x128xbf16>
    %cst = arith.constant dense<0.000000e+00> : vector<16x128xf32>
    %3 = tpu.matmul %1, %2, %cst {dimension_numbers = #tpu.dot_dimension_numbers<[1], [0], [0], [1], [0, 0, 1, 1], [], []>} : vector<16x128xbf16>, vector<128x128xbf16>, vector<16x128xf32> -> vector<16x128xf32>
    %c0_3 = arith.constant 0 : index
    %c0_4 = arith.constant 0 : index
    %4 = vector.load %arg3[%c0_3, %c0_4] : memref<128x2xbf16, #tpu.memory_space<vmem>>, vector<128x2xbf16>
    %cst_5 = arith.constant dense<0.000000e+00> : vector<16x2xf32>
    %5 = tpu.matmul %1, %4, %cst_5 {dimension_numbers = #tpu.dot_dimension_numbers<[1], [0], [0], [1], [0, 0, 1, 1], [], []>} : vector<16x128xbf16>, vector<128x2xbf16>, vector<16x2xf32> -> vector<16x2xf32>
    %6 = tpu.iota {dimensions = array<i32: 1>} : vector<16x2xi32>
    %c0_i32 = arith.constant 0 : i32
    %7 = vector.broadcast %c0_i32 : i32 to vector<16x2xi32>
    %8 = arith.cmpi eq, %6, %7 : vector<16x2xi32>
    %cst_6 = arith.constant 1.000000e+00 : f32
    %9 = vector.broadcast %cst_6 : f32 to vector<16x2xf32>
    %10 = arith.select %8, %5, %9 : vector<16x2xi1>, vector<16x2xf32>
    %c1_i32 = arith.constant 1 : i32
    %11 = vector.broadcast %c1_i32 : i32 to vector<16x2xi32>
    %12 = arith.cmpi eq, %6, %11 : vector<16x2xi32>
    %cst_7 = arith.constant 1.000000e+00 : f32
    %13 = vector.broadcast %cst_7 : f32 to vector<16x2xf32>
    %14 = arith.select %12, %5, %13 : vector<16x2xi1>, vector<16x2xf32>
    %cst_8 = arith.constant dense<0.000000e+00> : vector<16x16xf32>
    %15 = tpu.matmul %10, %14, %cst_8 {dimension_numbers = #tpu.dot_dimension_numbers<[1], [1], [0], [0], [0, 0, 1, 0], [], []>} : vector<16x2xf32>, vector<16x2xf32>, vector<16x16xf32> -> vector<16x16xf32>
    %cst_9 = arith.constant 2.000000e-01 : f32
    %16 = vector.broadcast %cst_9 : f32 to vector<16x16xf32>
    %17 = arith.mulf %16, %15 : vector<16x16xf32>
    %18 = arith.maximumf %15, %17 : vector<16x16xf32>
    %c0_10 = arith.constant 0 : index
    %c0_11 = arith.constant 0 : index
    %19 = vector.load %arg5[%c0_10, %c0_11] : memref<16x16xi8, #tpu.memory_space<vmem>>, vector<16x16xi8>
    %c0_i8 = arith.constant 0 : i8
    %20 = vector.broadcast %c0_i8 : i8 to vector<16x16xi8>
    %21 = arith.cmpi ne, %19, %20 : vector<16x16xi8>
    %cst_12 = arith.constant -1.000000e+30 : f32
    %22 = vector.broadcast %cst_12 : f32 to vector<16x16xf32>
    %23 = arith.select %21, %18, %22 : vector<16x16xi1>, vector<16x16xf32>
    %cst_13 = arith.constant dense<0xFF800000> : vector<16xf32>
    %24 = vector.multi_reduction <maximumf>, %23, %cst_13 [1] : vector<16x16xf32> to vector<16xf32>
    %25 = vector.shape_cast %24 : vector<16xf32> to vector<16x1xf32>
    %26 = vector.broadcast %25 : vector<16x1xf32> to vector<16x16xf32>
    %27 = arith.subf %23, %26 : vector<16x16xf32>
    %28 = math.exp %27 : vector<16x16xf32>
    %cst_14 = arith.constant dense<0.000000e+00> : vector<16xf32>
    %29 = vector.multi_reduction <add>, %28, %cst_14 [1] : vector<16x16xf32> to vector<16xf32>
    %30 = vector.shape_cast %29 : vector<16xf32> to vector<16x1xf32>
    %31 = arith.truncf %28 : vector<16x16xf32> to vector<16x16xbf16>
    %32 = arith.truncf %3 : vector<16x128xf32> to vector<16x128xbf16>
    %cst_15 = arith.constant dense<0.000000e+00> : vector<16x128xf32>
    %33 = tpu.matmul %31, %32, %cst_15 {dimension_numbers = #tpu.dot_dimension_numbers<[1], [0], [0], [1], [0, 0, 1, 1], [], []>} : vector<16x16xbf16>, vector<16x128xbf16>, vector<16x128xf32> -> vector<16x128xf32>
    %34 = tpu.reciprocal %30 {approx = true} : vector<16x1xf32> -> vector<16x1xf32>
    %35 = vector.broadcast %34 : vector<16x1xf32> to vector<16x128xf32>
    %36 = arith.mulf %33, %35 : vector<16x128xf32>
    %c0_16 = arith.constant 0 : index
    %c0_17 = arith.constant 0 : index
    %37 = vector.load %arg4[%c0_16, %c0_17] : memref<1x128xf32, #tpu.memory_space<vmem>>, vector<1x128xf32>
    %38 = vector.broadcast %37 : vector<1x128xf32> to vector<16x128xf32>
    %39 = arith.addf %36, %38 : vector<16x128xf32>
    %40 = arith.truncf %39 : vector<16x128xf32> to vector<16x128xbf16>
    %c0_18 = arith.constant 0 : index
    %c0_19 = arith.constant 0 : index
    %41 = vector.load %arg6[%c0_18, %c0_19] : memref<128x128xbf16, #tpu.memory_space<vmem>>, vector<128x128xbf16>
    %cst_20 = arith.constant dense<0.000000e+00> : vector<16x128xf32>
    %42 = tpu.matmul %40, %41, %cst_20 {dimension_numbers = #tpu.dot_dimension_numbers<[1], [0], [0], [1], [0, 0, 1, 1], [], []>} : vector<16x128xbf16>, vector<128x128xbf16>, vector<16x128xf32> -> vector<16x128xf32>
    %c0_21 = arith.constant 0 : index
    %c0_22 = arith.constant 0 : index
    %43 = vector.load %arg7[%c0_21, %c0_22] : memref<128x2xbf16, #tpu.memory_space<vmem>>, vector<128x2xbf16>
    %cst_23 = arith.constant dense<0.000000e+00> : vector<16x2xf32>
    %44 = tpu.matmul %40, %43, %cst_23 {dimension_numbers = #tpu.dot_dimension_numbers<[1], [0], [0], [1], [0, 0, 1, 1], [], []>} : vector<16x128xbf16>, vector<128x2xbf16>, vector<16x2xf32> -> vector<16x2xf32>
    %45 = tpu.iota {dimensions = array<i32: 1>} : vector<16x2xi32>
    %c0_i32_24 = arith.constant 0 : i32
    %46 = vector.broadcast %c0_i32_24 : i32 to vector<16x2xi32>
    %47 = arith.cmpi eq, %45, %46 : vector<16x2xi32>
    %cst_25 = arith.constant 1.000000e+00 : f32
    %48 = vector.broadcast %cst_25 : f32 to vector<16x2xf32>
    %49 = arith.select %47, %44, %48 : vector<16x2xi1>, vector<16x2xf32>
    %c1_i32_26 = arith.constant 1 : i32
    %50 = vector.broadcast %c1_i32_26 : i32 to vector<16x2xi32>
    %51 = arith.cmpi eq, %45, %50 : vector<16x2xi32>
    %cst_27 = arith.constant 1.000000e+00 : f32
    %52 = vector.broadcast %cst_27 : f32 to vector<16x2xf32>
    %53 = arith.select %51, %44, %52 : vector<16x2xi1>, vector<16x2xf32>
    %cst_28 = arith.constant dense<0.000000e+00> : vector<16x16xf32>
    %54 = tpu.matmul %49, %53, %cst_28 {dimension_numbers = #tpu.dot_dimension_numbers<[1], [1], [0], [0], [0, 0, 1, 0], [], []>} : vector<16x2xf32>, vector<16x2xf32>, vector<16x16xf32> -> vector<16x16xf32>
    %cst_29 = arith.constant 2.000000e-01 : f32
    %55 = vector.broadcast %cst_29 : f32 to vector<16x16xf32>
    %56 = arith.mulf %55, %54 : vector<16x16xf32>
    %57 = arith.maximumf %54, %56 : vector<16x16xf32>
    %c0_30 = arith.constant 0 : index
    %c0_31 = arith.constant 0 : index
    %58 = vector.load %arg9[%c0_30, %c0_31] : memref<16x16xi8, #tpu.memory_space<vmem>>, vector<16x16xi8>
    %c0_i8_32 = arith.constant 0 : i8
    %59 = vector.broadcast %c0_i8_32 : i8 to vector<16x16xi8>
    %60 = arith.cmpi ne, %58, %59 : vector<16x16xi8>
    %cst_33 = arith.constant -1.000000e+30 : f32
    %61 = vector.broadcast %cst_33 : f32 to vector<16x16xf32>
    %62 = arith.select %60, %57, %61 : vector<16x16xi1>, vector<16x16xf32>
    %cst_34 = arith.constant dense<0xFF800000> : vector<16xf32>
    %63 = vector.multi_reduction <maximumf>, %62, %cst_34 [1] : vector<16x16xf32> to vector<16xf32>
    %64 = vector.shape_cast %63 : vector<16xf32> to vector<16x1xf32>
    %65 = vector.broadcast %64 : vector<16x1xf32> to vector<16x16xf32>
    %66 = arith.subf %62, %65 : vector<16x16xf32>
    %67 = math.exp %66 : vector<16x16xf32>
    %cst_35 = arith.constant dense<0.000000e+00> : vector<16xf32>
    %68 = vector.multi_reduction <add>, %67, %cst_35 [1] : vector<16x16xf32> to vector<16xf32>
    %69 = vector.shape_cast %68 : vector<16xf32> to vector<16x1xf32>
    %70 = arith.truncf %67 : vector<16x16xf32> to vector<16x16xbf16>
    %71 = arith.truncf %42 : vector<16x128xf32> to vector<16x128xbf16>
    %cst_36 = arith.constant dense<0.000000e+00> : vector<16x128xf32>
    %72 = tpu.matmul %70, %71, %cst_36 {dimension_numbers = #tpu.dot_dimension_numbers<[1], [0], [0], [1], [0, 0, 1, 1], [], []>} : vector<16x16xbf16>, vector<16x128xbf16>, vector<16x128xf32> -> vector<16x128xf32>
    %73 = tpu.reciprocal %69 {approx = true} : vector<16x1xf32> -> vector<16x1xf32>
    %74 = vector.broadcast %73 : vector<16x1xf32> to vector<16x128xf32>
    %75 = arith.mulf %72, %74 : vector<16x128xf32>
    %c0_37 = arith.constant 0 : index
    %c0_38 = arith.constant 0 : index
    %76 = vector.load %arg8[%c0_37, %c0_38] : memref<1x128xf32, #tpu.memory_space<vmem>>, vector<1x128xf32>
    %77 = vector.broadcast %76 : vector<1x128xf32> to vector<16x128xf32>
    %78 = arith.addf %75, %77 : vector<16x128xf32>
    %c0_39 = arith.constant 0 : index
    %c0_40 = arith.constant 0 : index
    %79 = vector.load %arg11[%c0_39, %c0_40] : memref<16x128xf32, #tpu.memory_space<vmem>>, vector<16x128xf32>
    tpu.vector_store %arg11[%c0_39, %c0_40], %78 {strides = array<i32>} : memref<16x128xf32, #tpu.memory_space<vmem>>, vector<16x128xf32>,
    %c0_i32_41 = arith.constant 0 : i32
    %80 = arith.index_cast %c0_i32_41 : i32 to index
    %81 = memref.load %arg0[%80] : memref<8xi32, #tpu.memory_space<smem>>
    %82 = arith.index_cast %81 : i32 to index
    %c0_42 = arith.constant 0 : index
    %83 = vector.load %arg11[%82, %c0_42] : memref<16x128xf32, #tpu.memory_space<vmem>>, vector<1x128xf32>
    %84 = arith.index_cast %c0_i32_41 : i32 to index
    %c0_43 = arith.constant 0 : index
    %85 = vector.load %arg10[%84, %c0_43] : memref<8x128xf32, #tpu.memory_space<vmem>>, vector<1x128xf32>
    tpu.vector_store %arg10[%84, %c0_43], %83 {strides = array<i32>} : memref<8x128xf32, #tpu.memory_space<vmem>>, vector<1x128xf32>,
    %c1_i32_44 = arith.constant 1 : i32
    %86 = arith.index_cast %c1_i32_44 : i32 to index
    %87 = memref.load %arg0[%86] : memref<8xi32, #tpu.memory_space<smem>>
    %88 = arith.index_cast %87 : i32 to index
    %c0_45 = arith.constant 0 : index
    %89 = vector.load %arg11[%88, %c0_45] : memref<16x128xf32, #tpu.memory_space<vmem>>, vector<1x128xf32>
    %90 = arith.index_cast %c1_i32_44 : i32 to index
    %c0_46 = arith.constant 0 : index
    %91 = vector.load %arg10[%90, %c0_46] : memref<8x128xf32, #tpu.memory_space<vmem>>, vector<1x128xf32>
    tpu.vector_store %arg10[%90, %c0_46], %89 {strides = array<i32>} : memref<8x128xf32, #tpu.memory_space<vmem>>, vector<1x128xf32>,
    %c2_i32 = arith.constant 2 : i32
    %92 = arith.index_cast %c2_i32 : i32 to index
    %93 = memref.load %arg0[%92] : memref<8xi32, #tpu.memory_space<smem>>
    %94 = arith.index_cast %93 : i32 to index
    %c0_47 = arith.constant 0 : index
    %95 = vector.load %arg11[%94, %c0_47] : memref<16x128xf32, #tpu.memory_space<vmem>>, vector<1x128xf32>
    %96 = arith.index_cast %c2_i32 : i32 to index
    %c0_48 = arith.constant 0 : index
    %97 = vector.load %arg10[%96, %c0_48] : memref<8x128xf32, #tpu.memory_space<vmem>>, vector<1x128xf32>
    tpu.vector_store %arg10[%96, %c0_48], %95 {strides = array<i32>} : memref<8x128xf32, #tpu.memory_space<vmem>>, vector<1x128xf32>,
    %c3_i32 = arith.constant 3 : i32
    %98 = arith.index_cast %c3_i32 : i32 to index
    %99 = memref.load %arg0[%98] : memref<8xi32, #tpu.memory_space<smem>>
    %100 = arith.index_cast %99 : i32 to index
    %c0_49 = arith.constant 0 : index
    %101 = vector.load %arg11[%100, %c0_49] : memref<16x128xf32, #tpu.memory_space<vmem>>, vector<1x128xf32>
    %102 = arith.index_cast %c3_i32 : i32 to index
    %c0_50 = arith.constant 0 : index
    %103 = vector.load %arg10[%102, %c0_50] : memref<8x128xf32, #tpu.memory_space<vmem>>, vector<1x128xf32>
    tpu.vector_store %arg10[%102, %c0_50], %101 {strides = array<i32>} : memref<8x128xf32, #tpu.memory_space<vmem>>, vector<1x128xf32>,
    %c4_i32 = arith.constant 4 : i32
    %104 = arith.index_cast %c4_i32 : i32 to index
    %105 = memref.load %arg0[%104] : memref<8xi32, #tpu.memory_space<smem>>
    %106 = arith.index_cast %105 : i32 to index
    %c0_51 = arith.constant 0 : index
    %107 = vector.load %arg11[%106, %c0_51] : memref<16x128xf32, #tpu.memory_space<vmem>>, vector<1x128xf32>
    %108 = arith.index_cast %c4_i32 : i32 to index
    %c0_52 = arith.constant 0 : index
    %109 = vector.load %arg10[%108, %c0_52] : memref<8x128xf32, #tpu.memory_space<vmem>>, vector<1x128xf32>
    tpu.vector_store %arg10[%108, %c0_52], %107 {strides = array<i32>} : memref<8x128xf32, #tpu.memory_space<vmem>>, vector<1x128xf32>,
    %c5_i32 = arith.constant 5 : i32
    %110 = arith.index_cast %c5_i32 : i32 to index
    %111 = memref.load %arg0[%110] : memref<8xi32, #tpu.memory_space<smem>>
    %112 = arith.index_cast %111 : i32 to index
    %c0_53 = arith.constant 0 : index
    %113 = vector.load %arg11[%112, %c0_53] : memref<16x128xf32, #tpu.memory_space<vmem>>, vector<1x128xf32>
    %114 = arith.index_cast %c5_i32 : i32 to index
    %c0_54 = arith.constant 0 : index
    %115 = vector.load %arg10[%114, %c0_54] : memref<8x128xf32, #tpu.memory_space<vmem>>, vector<1x128xf32>
    tpu.vector_store %arg10[%114, %c0_54], %113 {strides = array<i32>} : memref<8x128xf32, #tpu.memory_space<vmem>>, vector<1x128xf32>,
    %c6_i32 = arith.constant 6 : i32
    %116 = arith.index_cast %c6_i32 : i32 to index
    %117 = memref.load %arg0[%116] : memref<8xi32, #tpu.memory_space<smem>>
    %118 = arith.index_cast %117 : i32 to index
    %c0_55 = arith.constant 0 : index
    %119 = vector.load %arg11[%118, %c0_55] : memref<16x128xf32, #tpu.memory_space<vmem>>, vector<1x128xf32>
    %120 = arith.index_cast %c6_i32 : i32 to index
    %c0_56 = arith.constant 0 : index
    %121 = vector.load %arg10[%120, %c0_56] : memref<8x128xf32, #tpu.memory_space<vmem>>, vector<1x128xf32>
    tpu.vector_store %arg10[%120, %c0_56], %119 {strides = array<i32>} : memref<8x128xf32, #tpu.memory_space<vmem>>, vector<1x128xf32>,
    %c7_i32 = arith.constant 7 : i32
    %122 = arith.index_cast %c7_i32 : i32 to index
    %123 = memref.load %arg0[%122] : memref<8xi32, #tpu.memory_space<smem>>
    %124 = arith.index_cast %123 : i32 to index
    %c0_57 = arith.constant 0 : index
    %125 = vector.load %arg11[%124, %c0_57] : memref<16x128xf32, #tpu.memory_space<vmem>>, vector<1x128xf32>
    %126 = arith.index_cast %c7_i32 : i32 to index
    %c0_58 = arith.constant 0 : index
    %127 = vector.load %arg10[%126, %c0_58] : memref<8x128xf32, #tpu.memory_space<vmem>>, vector<1x128xf32>
    tpu.vector_store %arg10[%126, %c0_58], %125 {strides = array<i32>} : memref<8x128xf32, #tpu.memory_space<vmem>>, vector<1x128xf32>,
    %c8_i32 = arith.constant 8 : i32
    return
  }
}

</mosaic_0001>

<llo_original>
// kernel: tpu_custom_call.1
$region0: #{tpu_custom_call.1}
  #allocation0 [shape = 'u32[]', space=smem, size = 0x4, offset = 0x4, fixed_abs, tag = 'smem constant byte address 0x4 - core index']
  #allocation1 [shape = 'u32[144,128]{1,0:T(1,128)}', space=vmem, size = 0x12000, scoped, tag = 'internal scratch']
  #allocation2 [shape = 'f32[16,128]{1,0:T(8,128)}', space=vmem, size = 0x2000, scoped, tag = 'scratch operand']
  %s0 = inlined_call_operand.vmem [shape: s32[8], index: 0, kind: input, shape index: {}]
  %s1 = inlined_call_operand.hbm [shape: f32[16,128], index: 1, kind: input, shape index: {}]
  %s2 = inlined_call_operand.vmem [shape: bf16[128,128], index: 2, kind: input, shape index: {}]
  %s3 = inlined_call_operand.vmem [shape: bf16[128,2], index: 3, kind: input, shape index: {}]
  %s4 = inlined_call_operand.hbm [shape: f32[1,128], index: 4, kind: input, shape index: {}]
  %s5 = inlined_call_operand.vmem [shape: s8[16,16], index: 5, kind: input, shape index: {}]
  %s6 = inlined_call_operand.vmem [shape: bf16[128,128], index: 6, kind: input, shape index: {}]
  %s7 = inlined_call_operand.vmem [shape: bf16[128,2], index: 7, kind: input, shape index: {}]
  %s8 = inlined_call_operand.vmem [shape: f32[1,128], index: 8, kind: input, shape index: {}]
  %s9 = inlined_call_operand.vmem [shape: s8[16,16], index: 9, kind: input, shape index: {}]
  %s10 = inlined_call_operand.hbm [shape: f32[8,128], index: 10, kind: output, shape index: {}]
  %s11 = sld [smem:[#allocation0]]
  $region62: #{tpu_custom_call.1} parent=0
    _
  %s13 = ssub.s32 1, %s11
  %s14 = scalar_select 0, %s13, %s11
  $region1: #{tpu_custom_call.1} parent=0
    #allocation3 [shape = 'u8[512]{0}', space=smem, size = 0x200, scoped, tag = 'input window, operand 0, single buffered']
    #allocation4 [shape = 's32[1]{0}', space=sflag, size = 0x4, scoped, tag = 'scoped memory for tpu_custom_call.1']
    #allocation5 [shape = 's32[1]{0}', space=sflag, size = 0x4, scoped, tag = 'scoped memory for tpu_custom_call.1']
    #allocation6 [shape = 's32[1]{0}', space=sflag, size = 0x4, scoped, tag = 'scoped memory for tpu_custom_call.1']
    #allocation7 [shape = 'u8[8192]{0}', space=vmem, size = 0x2000, scoped, tag = 'input window, operand 1, single buffered']
    #allocation8 [shape = 'u8[512]{0}', space=vmem, size = 0x400, scoped, tag = 'input window, operand 4, single buffered']
    #allocation9 [shape = 's32[1]{0}', space=sflag, size = 0x4, scoped, tag = 'scoped memory for tpu_custom_call.1']
    #allocation10 [shape = 'u8[4096]{0}', space=vmem, size = 0x1000, scoped, tag = 'output window, operand 0, single buffered']
    %15 = vsyncpa [#allocation6], 0
    %16 = vsyncpa [#allocation4], 0
    %17 = vsyncpa [#allocation9], 0
    %18 = vsyncpa [#allocation5], 0
    // Predicated region
    $region2: #{tpu_custom_call.1} parent=1 // pred_check
      _
    $region3: #{tpu_custom_call.1} parent=1 // pred_check_branch
      %20 = sbr.rel (0) target = $region5
    $region4: #{tpu_custom_call.1} parent=1 // pred_region
      %s22 = ssub.s32 16, 16
      %23 = vsyncadd [#allocation6], %s22
      %s25 = sshll.u32 %s0, 4
      %s26 = int_to_ptr.vmem [resolvable:$true] %s25
      %28 = dma.vmem_to_smem %s26, 16, [#allocation3], [#allocation6]
    $region5: #{tpu_custom_call.1} parent=1 // pred_fallthru
      _
    // Predicated region
    $region6: #{tpu_custom_call.1} parent=1 // pred_check
      _
    $region7: #{tpu_custom_call.1} parent=1 // pred_check_branch
      %30 = sbr.rel (0) target = $region9
    $region8: #{tpu_custom_call.1} parent=1 // pred_region
      %s32 = ssub.s32 256, 256
      %33 = vsyncadd [#allocation4], %s32
      %s34 = sshll.u32 [#allocation7], 4
      %s35 = int_to_ptr.vmem [resolvable:$true] %s34
      %40 = dma.hbm_to_vmem [thread:$0]  %s1, 256, %s35, [#allocation4], 128, 128, 8
    $region9: #{tpu_custom_call.1} parent=1 // pred_fallthru
      _
    // Predicated region
    $region10: #{tpu_custom_call.1} parent=1 // pred_check
      _
    $region11: #{tpu_custom_call.1} parent=1 // pred_check_branch
      %42 = sbr.rel (0) target = $region13
    $region12: #{tpu_custom_call.1} parent=1 // pred_region
      _
    $region13: #{tpu_custom_call.1} parent=1 // pred_fallthru
      _
    // Predicated region
    $region14: #{tpu_custom_call.1} parent=1 // pred_check
      _
    $region15: #{tpu_custom_call.1} parent=1 // pred_check_branch
      %44 = sbr.rel (0) target = $region17
    $region16: #{tpu_custom_call.1} parent=1 // pred_region
      _
    $region17: #{tpu_custom_call.1} parent=1 // pred_fallthru
      _
    // Predicated region
    $region18: #{tpu_custom_call.1} parent=1 // pred_check
      _
    $region19: #{tpu_custom_call.1} parent=1 // pred_check_branch
      %46 = sbr.rel (0) target = $region21
    $region20: #{tpu_custom_call.1} parent=1 // pred_region
      %s48 = ssub.s32 16, 16
      %49 = vsyncadd [#allocation9], %s48
      %s51 = sshll.u32 [#allocation8], 4
      %s52 = int_to_ptr.vmem [resolvable:$true] %s51
      %54 = dma.hbm_to_vmem [thread:$0]  %s4, 16, %s52, [#allocation9]
    $region21: #{tpu_custom_call.1} parent=1 // pred_fallthru
      _
    // Predicated region
    $region22: #{tpu_custom_call.1} parent=1 // pred_check
      _
    $region23: #{tpu_custom_call.1} parent=1 // pred_check_branch
      %56 = sbr.rel (0) target = $region25
    $region24: #{tpu_custom_call.1} parent=1 // pred_region
      _
    $region25: #{tpu_custom_call.1} parent=1 // pred_fallthru
      _
    // Predicated region
    $region26: #{tpu_custom_call.1} parent=1 // pred_check
      _
    $region27: #{tpu_custom_call.1} parent=1 // pred_check_branch
      %58 = sbr.rel (0) target = $region29
    $region28: #{tpu_custom_call.1} parent=1 // pred_region
      _
    $region29: #{tpu_custom_call.1} parent=1 // pred_fallthru
      _
    // Predicated region
    $region30: #{tpu_custom_call.1} parent=1 // pred_check
      _
    $region31: #{tpu_custom_call.1} parent=1 // pred_check_branch
      %60 = sbr.rel (0) target = $region33
    $region32: #{tpu_custom_call.1} parent=1 // pred_region
      _
    $region33: #{tpu_custom_call.1} parent=1 // pred_fallthru
      _
    // Predicated region
    $region34: #{tpu_custom_call.1} parent=1 // pred_check
      _
    $region35: #{tpu_custom_call.1} parent=1 // pred_check_branch
      %62 = sbr.rel (0) target = $region37
    $region36: #{tpu_custom_call.1} parent=1 // pred_region
      _
    $region37: #{tpu_custom_call.1} parent=1 // pred_fallthru
      _
    // Predicated region
    $region38: #{tpu_custom_call.1} parent=1 // pred_check
      _
    $region39: #{tpu_custom_call.1} parent=1 // pred_check_branch
      %64 = sbr.rel (0) target = $region41
    $region40: #{tpu_custom_call.1} parent=1 // pred_region
      _
    $region41: #{tpu_custom_call.1} parent=1 // pred_fallthru
      _
    // Predicated region
    $region42: #{tpu_custom_call.1} parent=1 // pred_check
      _
    $region43: #{tpu_custom_call.1} parent=1 // pred_check_branch
      %66 = sbr.rel (0) target = $region45
    $region44: #{tpu_custom_call.1} parent=1 // pred_region
      %67 = dma.done [#allocation6], 16
    $region45: #{tpu_custom_call.1} parent=1 // pred_fallthru
      _
    // Predicated region
    $region46: #{tpu_custom_call.1} parent=1 // pred_check
      _
    $region47: #{tpu_custom_call.1} parent=1 // pred_check_branch
      %69 = sbr.rel (0) target = $region49
    $region48: #{tpu_custom_call.1} parent=1 // pred_region
      %70 = dma.done [#allocation4], 256
    $region49: #{tpu_custom_call.1} parent=1 // pred_fallthru
      _
    // Predicated region
    $region50: #{tpu_custom_call.1} parent=1 // pred_check
      _
    $region51: #{tpu_custom_call.1} parent=1 // pred_check_branch
      %72 = sbr.rel (0) target = $region53
    $region52: #{tpu_custom_call.1} parent=1 // pred_region
      %73 = dma.done [#allocation9], 16
    $region53: #{tpu_custom_call.1} parent=1 // pred_fallthru
      _
    %74 = sfence
    %v78 = vld [vmem:[#allocation7] sm:$0xff]
    %v79 = vld [vmem:[#allocation7 + $0x8] sm:$0xff]
    %v80 = vpack.c.bf16 %v79, %v78
    %v81 = vld [vmem:[%s2] sm:$0xf]
    %v82 = vld [vmem:[%s2 + $0x4] sm:$0xf]
    %v83 = vld [vmem:[%s2 + $0x8] sm:$0xf]
    %v84 = vld [vmem:[%s2 + $0xc] sm:$0xf]
    %v85 = vld [vmem:[%s2 + $0x10] sm:$0xf]
    %v86 = vld [vmem:[%s2 + $0x14] sm:$0xf]
    %v87 = vld [vmem:[%s2 + $0x18] sm:$0xf]
    %v88 = vld [vmem:[%s2 + $0x1c] sm:$0xf]
    %v89 = vld [vmem:[%s2 + $0x20] sm:$0xf]
    %v90 = vld [vmem:[%s2 + $0x24] sm:$0xf]
    %v91 = vld [vmem:[%s2 + $0x28] sm:$0xf]
    %v92 = vld [vmem:[%s2 + $0x2c] sm:$0xf]
    %v93 = vld [vmem:[%s2 + $0x30] sm:$0xf]
    %v94 = vld [vmem:[%s2 + $0x34] sm:$0xf]
    %v95 = vld [vmem:[%s2 + $0x38] sm:$0xf]
    %v96 = vld [vmem:[%s2 + $0x3c] sm:$0xf]
    %v113 = vunpack.c.l.b16 %v81
    %v114 = vunpack.c.l.b16 %v82
    %v115 = vunpack.c.l.b16 %v83
    %v116 = vunpack.c.l.b16 %v84
    %v117 = vunpack.c.l.b16 %v85
    %v118 = vunpack.c.l.b16 %v86
    %v119 = vunpack.c.l.b16 %v87
    %v120 = vunpack.c.l.b16 %v88
    %v121 = vunpack.c.l.b16 %v89
    %v122 = vunpack.c.l.b16 %v90
    %v123 = vunpack.c.l.b16 %v91
    %v124 = vunpack.c.l.b16 %v92
    %v125 = vunpack.c.l.b16 %v93
    %v126 = vunpack.c.l.b16 %v94
    %v127 = vunpack.c.l.b16 %v95
    %v128 = vunpack.c.l.b16 %v96
    %v129 = vpack.c.b16 %v114, %v113
    %v130 = vpack.c.b16 %v116, %v115
    %v131 = vpack.c.b16 %v118, %v117
    %v132 = vpack.c.b16 %v120, %v119
    %v133 = vpack.c.b16 %v122, %v121
    %v134 = vpack.c.b16 %v124, %v123
    %v135 = vpack.c.b16 %v126, %v125
    %v136 = vpack.c.b16 %v128, %v127
    %145 = vmatprep.subr.bf16.mxu0 0
    %146 = vmatpush1.bf16.msra.mxu0 %v136
    %147 = vmatprep.subr.bf16.mxu0 0
    %148 = vmatpush1.bf16.msra.mxu0 %v135
    %149 = vmatprep.subr.bf16.mxu0 0
    %150 = vmatpush1.bf16.msra.mxu0 %v134
    %151 = vmatprep.subr.bf16.mxu0 0
    %152 = vmatpush1.bf16.msra.mxu0 %v133
    %153 = vmatprep.subr.bf16.mxu0 0
    %154 = vmatpush1.bf16.msra.mxu0 %v132
    %155 = vmatprep.subr.bf16.mxu0 0
    %156 = vmatpush1.bf16.msra.mxu0 %v131
    %157 = vmatprep.subr.bf16.mxu0 0
    %158 = vmatpush1.bf16.msra.mxu0 %v130
    %159 = vmatprep.subr.bf16.mxu0 0
    %160 = vmatpush1.bf16.msra.mxu0 %v129
    %161 = vmatprep.subr.bf16.mxu0 0
    %162 = vmatpush2.bf16.msra.mxu0 0
    %163 = vmatprep.subr.bf16.mxu0 0
    %164 = vmatpush2.bf16.msra.mxu0 0
    %165 = vmatprep.subr.bf16.mxu0 0
    %166 = vmatpush2.bf16.msra.mxu0 0
    %167 = vmatprep.subr.bf16.mxu0 0
    %168 = vmatpush2.bf16.msra.mxu0 0
    %169 = vmatprep.subr.bf16.mxu0 0
    %170 = vmatpush2.bf16.msra.mxu0 0
    %171 = vmatprep.subr.bf16.mxu0 0
    %172 = vmatpush2.bf16.msra.mxu0 0
    %173 = vmatprep.subr.bf16.mxu0 0
    %174 = vmatpush2.bf16.msra.mxu0 0
    %175 = vmatprep.subr.bf16.mxu0 0
    %176 = vmatpush2.bf16.msra.mxu0 0
    %177 = vmatprep.mubr.bf16.mxu0 0
    %178 = vmatmul.mubr.bf16.gmra.mxu0 %v80
    %v179 = vpop.f32.mrf.mxu0
    %v180 = vadd.f32 0.0, %v179
    %v181 = vpop.f32.mrf.mxu0
    %v182 = vpop.f32.mrf.mxu0
    %v183 = vadd.f32 0.0, %v182
    %v184 = vpop.f32.mrf.mxu0
    %185 = vdwg.mxu0
    %v186 = vld [vmem:[%s3] sm:$0xf]
    %v187 = vld [vmem:[%s3 + $0x4] sm:$0xf]
    %v188 = vld [vmem:[%s3 + $0x8] sm:$0xf]
    %v189 = vld [vmem:[%s3 + $0xc] sm:$0xf]
    %v190 = vld [vmem:[%s3 + $0x10] sm:$0xf]
    %v191 = vld [vmem:[%s3 + $0x14] sm:$0xf]
    %v192 = vld [vmem:[%s3 + $0x18] sm:$0xf]
    %v193 = vld [vmem:[%s3 + $0x1c] sm:$0xf]
    %v194 = vld [vmem:[%s3 + $0x20] sm:$0xf]
    %v195 = vld [vmem:[%s3 + $0x24] sm:$0xf]
    %v196 = vld [vmem:[%s3 + $0x28] sm:$0xf]
    %v197 = vld [vmem:[%s3 + $0x2c] sm:$0xf]
    %v198 = vld [vmem:[%s3 + $0x30] sm:$0xf]
    %v199 = vld [vmem:[%s3 + $0x34] sm:$0xf]
    %v200 = vld [vmem:[%s3 + $0x38] sm:$0xf]
    %v201 = vld [vmem:[%s3 + $0x3c] sm:$0xf]
    %v218 = vunpack.c.l.b16 %v186
    %v219 = vunpack.c.l.b16 %v187
    %v220 = vunpack.c.l.b16 %v188
    %v221 = vunpack.c.l.b16 %v189
    %v222 = vunpack.c.l.b16 %v190
    %v223 = vunpack.c.l.b16 %v191
    %v224 = vunpack.c.l.b16 %v192
    %v225 = vunpack.c.l.b16 %v193
    %v226 = vunpack.c.l.b16 %v194
    %v227 = vunpack.c.l.b16 %v195
    %v228 = vunpack.c.l.b16 %v196
    %v229 = vunpack.c.l.b16 %v197
    %v230 = vunpack.c.l.b16 %v198
    %v231 = vunpack.c.l.b16 %v199
    %v232 = vunpack.c.l.b16 %v200
    %v233 = vunpack.c.l.b16 %v201
    %v234 = vpack.c.b16 %v219, %v218
    %v235 = vpack.c.b16 %v221, %v220
    %v236 = vpack.c.b16 %v223, %v222
    %v237 = vpack.c.b16 %v225, %v224
    %v238 = vpack.c.b16 %v227, %v226
    %v239 = vpack.c.b16 %v229, %v228
    %v240 = vpack.c.b16 %v231, %v230
    %v241 = vpack.c.b16 %v233, %v232
    %250 = vmatprep.subr.bf16.mxu0 0
    %251 = vmatpush1.bf16.msra.mxu0 %v241
    %252 = vmatprep.subr.bf16.mxu0 0
    %253 = vmatpush1.bf16.msra.mxu0 %v240
    %254 = vmatprep.subr.bf16.mxu0 0
    %255 = vmatpush1.bf16.msra.mxu0 %v239
    %256 = vmatprep.subr.bf16.mxu0 0
    %257 = vmatpush1.bf16.msra.mxu0 %v238
    %258 = vmatprep.subr.bf16.mxu0 0
    %259 = vmatpush1.bf16.msra.mxu0 %v237
    %260 = vmatprep.subr.bf16.mxu0 0
    %261 = vmatpush1.bf16.msra.mxu0 %v236
    %262 = vmatprep.subr.bf16.mxu0 0
    %263 = vmatpush1.bf16.msra.mxu0 %v235
    %264 = vmatprep.subr.bf16.mxu0 0
    %265 = vmatpush1.bf16.msra.mxu0 %v234
    %266 = vmatprep.subr.bf16.mxu0 0
    %267 = vmatpush2.bf16.msra.mxu0 0
    %268 = vmatprep.subr.bf16.mxu0 0
    %269 = vmatpush2.bf16.msra.mxu0 0
    %270 = vmatprep.subr.bf16.mxu0 0
    %271 = vmatpush2.bf16.msra.mxu0 0
    %272 = vmatprep.subr.bf16.mxu0 0
    %273 = vmatpush2.bf16.msra.mxu0 0
    %274 = vmatprep.subr.bf16.mxu0 0
    %275 = vmatpush2.bf16.msra.mxu0 0
    %276 = vmatprep.subr.bf16.mxu0 0
    %277 = vmatpush2.bf16.msra.mxu0 0
    %278 = vmatprep.subr.bf16.mxu0 0
    %279 = vmatpush2.bf16.msra.mxu0 0
    %280 = vmatprep.subr.bf16.mxu0 0
    %281 = vmatpush2.bf16.msra.mxu0 0
    %282 = vmatprep.mubr.bf16.mxu0 0
    %283 = vmatmul.mubr.bf16.gmra.mxu0 %v80
    %v284 = vpop.f32.mrf.mxu0
    %v285 = vadd.f32 0.0, %v284
    %v286 = vpop.f32.mrf.mxu0
    %v287 = vpop.f32.mrf.mxu0
    %v288 = vadd.f32 0.0, %v287
    %v289 = vpop.f32.mrf.mxu0
    %290 = vdwg.mxu0
    %v291 = vlaneseq
    %v292 = vand.u32 %v291, 127
    %vm293 = vcmp.eq.s32.totalorder %v292, 0
    %v294 = vsel %vm293, %v285, 1.0
    %v295 = vsel %vm293, %v288, 1.0
    %vm296 = vcmp.eq.s32.totalorder %v292, 1
    %v297 = vsel %vm296, %v285, 1.0
    %v298 = vsel %vm296, %v288, 1.0
    %vm299 = vcmask 15360
    %v301 = vsel %vm299, %v294, 0
    %v304 = vsel %vm299, %v295, 0
    %v307 = vsel %vm299, %v297, 0
    %v310 = vsel %vm299, %v298, 0
    %312 = vmatprep.subr.mxu0 0.0
    %313 = vmatpush1.xpose.msra.mxu0 0.0
    %314 = vmatprep.subr.mxu0 0.0
    %315 = vmatpush1.xpose.msra.mxu0 0.0
    %316 = vmatprep.subr.mxu0 0.0
    %317 = vmatpush1.xpose.msra.mxu0 0.0
    %318 = vmatprep.subr.mxu0 0.0
    %319 = vmatpush1.xpose.msra.mxu0 0.0
    %320 = vmatprep.subr.mxu0 0.0
    %321 = vmatpush1.xpose.msra.mxu0 0.0
    %322 = vmatprep.subr.mxu0 0.0
    %323 = vmatpush1.xpose.msra.mxu0 0.0
    %324 = vmatprep.subr.mxu0 0.0
    %325 = vmatpush1.xpose.msra.mxu0 0.0
    %326 = vmatprep.subr.mxu0 0.0
    %327 = vmatpush1.xpose.msra.mxu0 0.0
    %328 = vmatprep.subr.mxu0 0.0
    %329 = vmatpush1.xpose.msra.mxu0 0.0
    %330 = vmatprep.subr.mxu0 0.0
    %331 = vmatpush1.xpose.msra.mxu0 0.0
    %332 = vmatprep.subr.mxu0 0.0
    %333 = vmatpush1.xpose.msra.mxu0 0.0
    %334 = vmatprep.subr.mxu0 0.0
    %335 = vmatpush1.xpose.msra.mxu0 0.0
    %336 = vmatprep.subr.mxu0 0.0
    %337 = vmatpush1.xpose.msra.mxu0 0.0
    %338 = vmatprep.subr.mxu0 0.0
    %339 = vmatpush1.xpose.msra.mxu0 0.0
    %340 = vmatprep.subr.mxu0 0.0
    %341 = vmatpush1.xpose.msra.mxu0 %v310
    %342 = vmatprep.subr.mxu0 0.0
    %343 = vmatpush1.xpose.msra.mxu0 %v307
    %344 = vmatprep.subr.mxu0 0.0
    %345 = vmatpush2.xpose.msra.mxu0 0.0
    %346 = vmatprep.subr.mxu0 0.0
    %347 = vmatpush2.xpose.msra.mxu0 0.0
    %348 = vmatprep.subr.mxu0 0.0
    %349 = vmatpush2.xpose.msra.mxu0 0.0
    %350 = vmatprep.subr.mxu0 0.0
    %351 = vmatpush2.xpose.msra.mxu0 0.0
    %352 = vmatprep.subr.mxu0 0.0
    %353 = vmatpush2.xpose.msra.mxu0 0.0
    %354 = vmatprep.subr.mxu0 0.0
    %355 = vmatpush2.xpose.msra.mxu0 0.0
    %356 = vmatprep.subr.mxu0 0.0
    %357 = vmatpush2.xpose.msra.mxu0 0.0
    %358 = vmatprep.subr.mxu0 0.0
    %359 = vmatpush2.xpose.msra.mxu0 0.0
    %360 = vmatprep.subr.mxu0 0.0
    %361 = vmatpush2.xpose.msra.mxu0 0.0
    %362 = vmatprep.subr.mxu0 0.0
    %363 = vmatpush2.xpose.msra.mxu0 0.0
    %364 = vmatprep.subr.mxu0 0.0
    %365 = vmatpush2.xpose.msra.mxu0 0.0
    %366 = vmatprep.subr.mxu0 0.0
    %367 = vmatpush2.xpose.msra.mxu0 0.0
    %368 = vmatprep.subr.mxu0 0.0
    %369 = vmatpush2.xpose.msra.mxu0 0.0
    %370 = vmatprep.subr.mxu0 0.0
    %371 = vmatpush2.xpose.msra.mxu0 0.0
    %372 = vmatprep.subr.mxu0 0.0
    %373 = vmatpush2.xpose.msra.mxu0 0.0
    %374 = vmatprep.subr.mxu0 0.0
    %375 = vmatpush2.xpose.msra.mxu0 0.0
    %376 = vmatprep.mubr.f32.mxu0 0.0
    %377 = vmatmul.mubr.f32.gmra.mxu0 %v301
    %v378 = vpop.f32.mrf.mxu0
    %v379 = vadd.f32 0.0, %v378
    %v380 = vpop.f32.mrf.mxu0
    %381 = vmatprep.mubr.f32.mxu0 0.0
    %382 = vmatmul.mubr.f32.gmra.mxu0 %v304
    %v383 = vpop.f32.mrf.mxu0
    %v384 = vadd.f32 0.0, %v383
    %v385 = vpop.f32.mrf.mxu0
    %386 = vdwg.mxu0
    %v387 = vmul.f32 %v379, 0.2
    %v388 = vmul.f32 %v384, 0.2
    %v389 = vmax.f32 %v379, %v387
    %v390 = vmax.f32 %v384, %v388
    %v391 = vld [vmem:[%s5] sm:$0x3]
    %v392 = vld [vmem:[%s5 + $0x2] sm:$0x3]
    %vm393 = vnez %v391
    %vm394 = vnez %v392
    %v395 = vsel %vm393, 16843009, 0
    %v396 = vsel %vm394, 16843009, 0
    %v397 = vunpack.c.0.s8 %v395
    %v398 = vunpack.c.0.s8 %v396
    %vm399 = vcmp.ne.s32.totalorder %v397, 0
    %vm400 = vcmp.ne.s32.totalorder %v398, 0
    %v401 = vsel %vm399, %v389, -1e+30
    %v402 = vsel %vm400, %v390, -1e+30
    %vm403 = vcmask 130048
    %v404 = vsel %vm403, %v401, -inf
    %405 = vmax.xlane.f32.xlu0 %v404
    %v406 = vpop.xlane.xlu0 %405
    %v407 = vsel %vm403, %v402, -inf
    %408 = vmax.xlane.f32.xlu0 %v407
    %v409 = vpop.xlane.xlu0 %408
    %v410 = vsub.f32 %v401, %v406
    %v411 = vsub.f32 %v402, %v409
    %v412 = vmul.f32 %v410, 1.442695
    %v413 = vpow.pop %v412
    %v414 = vmul.f32 %v411, 1.442695
    %v415 = vpow.pop %v414
    %v416 = vsel %vm403, %v413, 0.0
    %417 = vadd.xlane.f32.xlu0 %v416
    %v418 = vpop.xlane.xlu0 %417
    %v419 = vsel %vm403, %v415, 0.0
    %420 = vadd.xlane.f32.xlu0 %v419
    %v421 = vpop.xlane.xlu0 %420
    %v422 = vpack.c.bf16 %v415, %v413
    %v423 = vpack.c.bf16 %v183, %v180
    %v425 = vsel %vm403, %v422, 0
    %427 = vmatprep.subr.bf16.mxu0 0
    %428 = vmatpush1.bf16.msra.mxu0 0
    %429 = vmatprep.subr.bf16.mxu0 0
    %430 = vmatpush1.bf16.msra.mxu0 0
    %431 = vmatprep.subr.bf16.mxu0 0
    %432 = vmatpush1.bf16.msra.mxu0 0
    %433 = vmatprep.subr.bf16.mxu0 0
    %434 = vmatpush1.bf16.msra.mxu0 0
    %435 = vmatprep.subr.bf16.mxu0 0
    %436 = vmatpush1.bf16.msra.mxu0 0
    %437 = vmatprep.subr.bf16.mxu0 0
    %438 = vmatpush1.bf16.msra.mxu0 0
    %439 = vmatprep.subr.bf16.mxu0 0
    %440 = vmatpush1.bf16.msra.mxu0 0
    %441 = vmatprep.subr.bf16.mxu0 0
    %442 = vmatpush1.bf16.msra.mxu0 %v423
    %443 = vmatprep.subr.bf16.mxu0 0
    %444 = vmatpush2.bf16.msra.mxu0 0
    %445 = vmatprep.subr.bf16.mxu0 0
    %446 = vmatpush2.bf16.msra.mxu0 0
    %447 = vmatprep.subr.bf16.mxu0 0
    %448 = vmatpush2.bf16.msra.mxu0 0
    %449 = vmatprep.subr.bf16.mxu0 0
    %450 = vmatpush2.bf16.msra.mxu0 0
    %451 = vmatprep.subr.bf16.mxu0 0
    %452 = vmatpush2.bf16.msra.mxu0 0
    %453 = vmatprep.subr.bf16.mxu0 0
    %454 = vmatpush2.bf16.msra.mxu0 0
    %455 = vmatprep.subr.bf16.mxu0 0
    %456 = vmatpush2.bf16.msra.mxu0 0
    %457 = vmatprep.subr.bf16.mxu0 0
    %458 = vmatpush2.bf16.msra.mxu0 0
    %459 = vmatprep.mubr.bf16.mxu0 0
    %460 = vmatmul.mubr.bf16.gmra.mxu0 %v425
    %v461 = vpop.f32.mrf.mxu0
    %v462 = vadd.f32 0.0, %v461
    %v463 = vpop.f32.mrf.mxu0
    %v464 = vpop.f32.mrf.mxu0
    %v465 = vadd.f32 0.0, %v464
    %v466 = vpop.f32.mrf.mxu0
    %467 = vdwg.mxu0
    %v468 = vrcp.pop %v418
    %v469 = vrcp.pop %v421
    %v470 = vmul.f32 %v462, %v468
    %v471 = vmul.f32 %v465, %v469
    %v472 = vld [vmem:[#allocation8] sm:$0x1]
    %v474 = vlaneseq
    %v475 = vshrl.u32 %v474, 7
    %v476 = vsub.s32 0, %v475
    %v477 = vrot.slane %v472, %v476
    %v479 = vadd.f32 %v470, %v477
    %v480 = vadd.f32 %v471, %v477
    %v481 = vpack.c.bf16 %v480, %v479
    %v482 = vld [vmem:[%s6] sm:$0xf]
    %v483 = vld [vmem:[%s6 + $0x4] sm:$0xf]
    %v484 = vld [vmem:[%s6 + $0x8] sm:$0xf]
    %v485 = vld [vmem:[%s6 + $0xc] sm:$0xf]
    %v486 = vld [vmem:[%s6 + $0x10] sm:$0xf]
    %v487 = vld [vmem:[%s6 + $0x14] sm:$0xf]
    %v488 = vld [vmem:[%s6 + $0x18] sm:$0xf]
    %v489 = vld [vmem:[%s6 + $0x1c] sm:$0xf]
    %v490 = vld [vmem:[%s6 + $0x20] sm:$0xf]
    %v491 = vld [vmem:[%s6 + $0x24] sm:$0xf]
    %v492 = vld [vmem:[%s6 + $0x28] sm:$0xf]
    %v493 = vld [vmem:[%s6 + $0x2c] sm:$0xf]
    %v494 = vld [vmem:[%s6 + $0x30] sm:$0xf]
    %v495 = vld [vmem:[%s6 + $0x34] sm:$0xf]
    %v496 = vld [vmem:[%s6 + $0x38] sm:$0xf]
    %v497 = vld [vmem:[%s6 + $0x3c] sm:$0xf]
    %v514 = vunpack.c.l.b16 %v482
    %v515 = vunpack.c.l.b16 %v483
    %v516 = vunpack.c.l.b16 %v484
    %v517 = vunpack.c.l.b16 %v485
    %v518 = vunpack.c.l.b16 %v486
    %v519 = vunpack.c.l.b16 %v487
    %v520 = vunpack.c.l.b16 %v488
    %v521 = vunpack.c.l.b16 %v489
    %v522 = vunpack.c.l.b16 %v490
    %v523 = vunpack.c.l.b16 %v491
    %v524 = vunpack.c.l.b16 %v492
    %v525 = vunpack.c.l.b16 %v493
    %v526 = vunpack.c.l.b16 %v494
    %v527 = vunpack.c.l.b16 %v495
    %v528 = vunpack.c.l.b16 %v496
    %v529 = vunpack.c.l.b16 %v497
    %v530 = vpack.c.b16 %v515, %v514
    %v531 = vpack.c.b16 %v517, %v516
    %v532 = vpack.c.b16 %v519, %v518
    %v533 = vpack.c.b16 %v521, %v520
    %v534 = vpack.c.b16 %v523, %v522
    %v535 = vpack.c.b16 %v525, %v524
    %v536 = vpack.c.b16 %v527, %v526
    %v537 = vpack.c.b16 %v529, %v528
    %546 = vmatprep.subr.bf16.mxu0 0
    %547 = vmatpush1.bf16.msra.mxu0 %v537
    %548 = vmatprep.subr.bf16.mxu0 0
    %549 = vmatpush1.bf16.msra.mxu0 %v536
    %550 = vmatprep.subr.bf16.mxu0 0
    %551 = vmatpush1.bf16.msra.mxu0 %v535
    %552 = vmatprep.subr.bf16.mxu0 0
    %553 = vmatpush1.bf16.msra.mxu0 %v534
    %554 = vmatprep.subr.bf16.mxu0 0
    %555 = vmatpush1.bf16.msra.mxu0 %v533
    %556 = vmatprep.subr.bf16.mxu0 0
    %557 = vmatpush1.bf16.msra.mxu0 %v532
    %558 = vmatprep.subr.bf16.mxu0 0
    %559 = vmatpush1.bf16.msra.mxu0 %v531
    %560 = vmatprep.subr.bf16.mxu0 0
    %561 = vmatpush1.bf16.msra.mxu0 %v530
    %562 = vmatprep.subr.bf16.mxu0 0
    %563 = vmatpush2.bf16.msra.mxu0 0
    %564 = vmatprep.subr.bf16.mxu0 0
    %565 = vmatpush2.bf16.msra.mxu0 0
    %566 = vmatprep.subr.bf16.mxu0 0
    %567 = vmatpush2.bf16.msra.mxu0 0
    %568 = vmatprep.subr.bf16.mxu0 0
    %569 = vmatpush2.bf16.msra.mxu0 0
    %570 = vmatprep.subr.bf16.mxu0 0
    %571 = vmatpush2.bf16.msra.mxu0 0
    %572 = vmatprep.subr.bf16.mxu0 0
    %573 = vmatpush2.bf16.msra.mxu0 0
    %574 = vmatprep.subr.bf16.mxu0 0
    %575 = vmatpush2.bf16.msra.mxu0 0
    %576 = vmatprep.subr.bf16.mxu0 0
    %577 = vmatpush2.bf16.msra.mxu0 0
    %578 = vmatprep.mubr.bf16.mxu0 0
    %579 = vmatmul.mubr.bf16.gmra.mxu0 %v481
    %v580 = vpop.f32.mrf.mxu0
    %v581 = vadd.f32 0.0, %v580
    %v582 = vpop.f32.mrf.mxu0
    %v583 = vpop.f32.mrf.mxu0
    %v584 = vadd.f32 0.0, %v583
    %v585 = vpop.f32.mrf.mxu0
    %586 = vdwg.mxu0
    %v587 = vld [vmem:[%s7] sm:$0xf]
    %v588 = vld [vmem:[%s7 + $0x4] sm:$0xf]
    %v589 = vld [vmem:[%s7 + $0x8] sm:$0xf]
    %v590 = vld [vmem:[%s7 + $0xc] sm:$0xf]
    %v591 = vld [vmem:[%s7 + $0x10] sm:$0xf]
    %v592 = vld [vmem:[%s7 + $0x14] sm:$0xf]
    %v593 = vld [vmem:[%s7 + $0x18] sm:$0xf]
    %v594 = vld [vmem:[%s7 + $0x1c] sm:$0xf]
    %v595 = vld [vmem:[%s7 + $0x20] sm:$0xf]
    %v596 = vld [vmem:[%s7 + $0x24] sm:$0xf]
    %v597 = vld [vmem:[%s7 + $0x28] sm:$0xf]
    %v598 = vld [vmem:[%s7 + $0x2c] sm:$0xf]
    %v599 = vld [vmem:[%s7 + $0x30] sm:$0xf]
    %v600 = vld [vmem:[%s7 + $0x34] sm:$0xf]
    %v601 = vld [vmem:[%s7 + $0x38] sm:$0xf]
    %v602 = vld [vmem:[%s7 + $0x3c] sm:$0xf]
    %v619 = vunpack.c.l.b16 %v587
    %v620 = vunpack.c.l.b16 %v588
    %v621 = vunpack.c.l.b16 %v589
    %v622 = vunpack.c.l.b16 %v590
    %v623 = vunpack.c.l.b16 %v591
    %v624 = vunpack.c.l.b16 %v592
    %v625 = vunpack.c.l.b16 %v593
    %v626 = vunpack.c.l.b16 %v594
    %v627 = vunpack.c.l.b16 %v595
    %v628 = vunpack.c.l.b16 %v596
    %v629 = vunpack.c.l.b16 %v597
    %v630 = vunpack.c.l.b16 %v598
    %v631 = vunpack.c.l.b16 %v599
    %v632 = vunpack.c.l.b16 %v600
    %v633 = vunpack.c.l.b16 %v601
    %v634 = vunpack.c.l.b16 %v602
    %v635 = vpack.c.b16 %v620, %v619
    %v636 = vpack.c.b16 %v622, %v621
    %v637 = vpack.c.b16 %v624, %v623
    %v638 = vpack.c.b16 %v626, %v625
    %v639 = vpack.c.b16 %v628, %v627
    %v640 = vpack.c.b16 %v630, %v629
    %v641 = vpack.c.b16 %v632, %v631
    %v642 = vpack.c.b16 %v634, %v633
    %651 = vmatprep.subr.bf16.mxu0 0
    %652 = vmatpush1.bf16.msra.mxu0 %v642
    %653 = vmatprep.subr.bf16.mxu0 0
    %654 = vmatpush1.bf16.msra.mxu0 %v641
    %655 = vmatprep.subr.bf16.mxu0 0
    %656 = vmatpush1.bf16.msra.mxu0 %v640
    %657 = vmatprep.subr.bf16.mxu0 0
    %658 = vmatpush1.bf16.msra.mxu0 %v639
    %659 = vmatprep.subr.bf16.mxu0 0
    %660 = vmatpush1.bf16.msra.mxu0 %v638
    %661 = vmatprep.subr.bf16.mxu0 0
    %662 = vmatpush1.bf16.msra.mxu0 %v637
    %663 = vmatprep.subr.bf16.mxu0 0
    %664 = vmatpush1.bf16.msra.mxu0 %v636
    %665 = vmatprep.subr.bf16.mxu0 0
    %666 = vmatpush1.bf16.msra.mxu0 %v635
    %667 = vmatprep.subr.bf16.mxu0 0
    %668 = vmatpush2.bf16.msra.mxu0 0
    %669 = vmatprep.subr.bf16.mxu0 0
    %670 = vmatpush2.bf16.msra.mxu0 0
    %671 = vmatprep.subr.bf16.mxu0 0
    %672 = vmatpush2.bf16.msra.mxu0 0
    %673 = vmatprep.subr.bf16.mxu0 0
    %674 = vmatpush2.bf16.msra.mxu0 0
    %675 = vmatprep.subr.bf16.mxu0 0
    %676 = vmatpush2.bf16.msra.mxu0 0
    %677 = vmatprep.subr.bf16.mxu0 0
    %678 = vmatpush2.bf16.msra.mxu0 0
    %679 = vmatprep.subr.bf16.mxu0 0
    %680 = vmatpush2.bf16.msra.mxu0 0
    %681 = vmatprep.subr.bf16.mxu0 0
    %682 = vmatpush2.bf16.msra.mxu0 0
    %683 = vmatprep.mubr.bf16.mxu0 0
    %684 = vmatmul.mubr.bf16.gmra.mxu0 %v481
    %v685 = vpop.f32.mrf.mxu0
    %v686 = vadd.f32 0.0, %v685
    %v687 = vpop.f32.mrf.mxu0
    %v688 = vpop.f32.mrf.mxu0
    %v689 = vadd.f32 0.0, %v688
    %v690 = vpop.f32.mrf.mxu0
    %691 = vdwg.mxu0
    %v692 = vsel %vm293, %v686, 1.0
    %v693 = vsel %vm293, %v689, 1.0
    %v694 = vsel %vm296, %v686, 1.0
    %v695 = vsel %vm296, %v689, 1.0
    %v697 = vsel %vm299, %v692, 0
    %v700 = vsel %vm299, %v693, 0
    %v703 = vsel %vm299, %v694, 0
    %v706 = vsel %vm299, %v695, 0
    %708 = vmatprep.subr.mxu0 0.0
    %709 = vmatpush1.xpose.msra.mxu0 0.0
    %710 = vmatprep.subr.mxu0 0.0
    %711 = vmatpush1.xpose.msra.mxu0 0.0
    %712 = vmatprep.subr.mxu0 0.0
    %713 = vmatpush1.xpose.msra.mxu0 0.0
    %714 = vmatprep.subr.mxu0 0.0
    %715 = vmatpush1.xpose.msra.mxu0 0.0
    %716 = vmatprep.subr.mxu0 0.0
    %717 = vmatpush1.xpose.msra.mxu0 0.0
    %718 = vmatprep.subr.mxu0 0.0
    %719 = vmatpush1.xpose.msra.mxu0 0.0
    %720 = vmatprep.subr.mxu0 0.0
    %721 = vmatpush1.xpose.msra.mxu0 0.0
    %722 = vmatprep.subr.mxu0 0.0
    %723 = vmatpush1.xpose.msra.mxu0 0.0
    %724 = vmatprep.subr.mxu0 0.0
    %725 = vmatpush1.xpose.msra.mxu0 0.0
    %726 = vmatprep.subr.mxu0 0.0
    %727 = vmatpush1.xpose.msra.mxu0 0.0
    %728 = vmatprep.subr.mxu0 0.0
    %729 = vmatpush1.xpose.msra.mxu0 0.0
    %730 = vmatprep.subr.mxu0 0.0
    %731 = vmatpush1.xpose.msra.mxu0 0.0
    %732 = vmatprep.subr.mxu0 0.0
    %733 = vmatpush1.xpose.msra.mxu0 0.0
    %734 = vmatprep.subr.mxu0 0.0
    %735 = vmatpush1.xpose.msra.mxu0 0.0
    %736 = vmatprep.subr.mxu0 0.0
    %737 = vmatpush1.xpose.msra.mxu0 %v706
    %738 = vmatprep.subr.mxu0 0.0
    %739 = vmatpush1.xpose.msra.mxu0 %v703
    %740 = vmatprep.subr.mxu0 0.0
    %741 = vmatpush2.xpose.msra.mxu0 0.0
    %742 = vmatprep.subr.mxu0 0.0
    %743 = vmatpush2.xpose.msra.mxu0 0.0
    %744 = vmatprep.subr.mxu0 0.0
    %745 = vmatpush2.xpose.msra.mxu0 0.0
    %746 = vmatprep.subr.mxu0 0.0
    %747 = vmatpush2.xpose.msra.mxu0 0.0
    %748 = vmatprep.subr.mxu0 0.0
    %749 = vmatpush2.xpose.msra.mxu0 0.0
    %750 = vmatprep.subr.mxu0 0.0
    %751 = vmatpush2.xpose.msra.mxu0 0.0
    %752 = vmatprep.subr.mxu0 0.0
    %753 = vmatpush2.xpose.msra.mxu0 0.0
    %754 = vmatprep.subr.mxu0 0.0
    %755 = vmatpush2.xpose.msra.mxu0 0.0
    %756 = vmatprep.subr.mxu0 0.0
    %757 = vmatpush2.xpose.msra.mxu0 0.0
    %758 = vmatprep.subr.mxu0 0.0
    %759 = vmatpush2.xpose.msra.mxu0 0.0
    %760 = vmatprep.subr.mxu0 0.0
    %761 = vmatpush2.xpose.msra.mxu0 0.0
    %762 = vmatprep.subr.mxu0 0.0
    %763 = vmatpush2.xpose.msra.mxu0 0.0
    %764 = vmatprep.subr.mxu0 0.0
    %765 = vmatpush2.xpose.msra.mxu0 0.0
    %766 = vmatprep.subr.mxu0 0.0
    %767 = vmatpush2.xpose.msra.mxu0 0.0
    %768 = vmatprep.subr.mxu0 0.0
    %769 = vmatpush2.xpose.msra.mxu0 0.0
    %770 = vmatprep.subr.mxu0 0.0
    %771 = vmatpush2.xpose.msra.mxu0 0.0
    %772 = vmatprep.mubr.f32.mxu0 0.0
    %773 = vmatmul.mubr.f32.gmra.mxu0 %v697
    %v774 = vpop.f32.mrf.mxu0
    %v775 = vadd.f32 0.0, %v774
    %v776 = vpop.f32.mrf.mxu0
    %777 = vmatprep.mubr.f32.mxu0 0.0
    %778 = vmatmul.mubr.f32.gmra.mxu0 %v700
    %v779 = vpop.f32.mrf.mxu0
    %v780 = vadd.f32 0.0, %v779
    %v781 = vpop.f32.mrf.mxu0
    %782 = vdwg.mxu0
    %v783 = vmul.f32 %v775, 0.2
    %v784 = vmul.f32 %v780, 0.2
    %v785 = vmax.f32 %v775, %v783
    %v786 = vmax.f32 %v780, %v784
    %v787 = vld [vmem:[%s9] sm:$0x3]
    %v788 = vld [vmem:[%s9 + $0x2] sm:$0x3]
    %vm789 = vnez %v787
    %vm790 = vnez %v788
    %v791 = vsel %vm789, 16843009, 0
    %v792 = vsel %vm790, 16843009, 0
    %v793 = vunpack.c.0.s8 %v791
    %v794 = vunpack.c.0.s8 %v792
    %vm795 = vcmp.ne.s32.totalorder %v793, 0
    %vm796 = vcmp.ne.s32.totalorder %v794, 0
    %v797 = vsel %vm795, %v785, -1e+30
    %v798 = vsel %vm796, %v786, -1e+30
    %v799 = vsel %vm403, %v797, -inf
    %800 = vmax.xlane.f32.xlu0 %v799
    %v801 = vpop.xlane.xlu0 %800
    %v802 = vsel %vm403, %v798, -inf
    %803 = vmax.xlane.f32.xlu0 %v802
    %v804 = vpop.xlane.xlu0 %803
    %v805 = vsub.f32 %v797, %v801
    %v806 = vsub.f32 %v798, %v804
    %v807 = vmul.f32 %v805, 1.442695
    %v808 = vpow.pop %v807
    %v809 = vmul.f32 %v806, 1.442695
    %v810 = vpow.pop %v809
    %v811 = vsel %vm403, %v808, 0.0
    %812 = vadd.xlane.f32.xlu0 %v811
    %v813 = vpop.xlane.xlu0 %812
    %v814 = vsel %vm403, %v810, 0.0
    %815 = vadd.xlane.f32.xlu0 %v814
    %v816 = vpop.xlane.xlu0 %815
    %v817 = vpack.c.bf16 %v810, %v808
    %v818 = vpack.c.bf16 %v584, %v581
    %v820 = vsel %vm403, %v817, 0
    %822 = vmatprep.subr.bf16.mxu0 0
    %823 = vmatpush1.bf16.msra.mxu0 0
    %824 = vmatprep.subr.bf16.mxu0 0
    %825 = vmatpush1.bf16.msra.mxu0 0
    %826 = vmatprep.subr.bf16.mxu0 0
    %827 = vmatpush1.bf16.msra.mxu0 0
    %828 = vmatprep.subr.bf16.mxu0 0
    %829 = vmatpush1.bf16.msra.mxu0 0
    %830 = vmatprep.subr.bf16.mxu0 0
    %831 = vmatpush1.bf16.msra.mxu0 0
    %832 = vmatprep.subr.bf16.mxu0 0
    %833 = vmatpush1.bf16.msra.mxu0 0
    %834 = vmatprep.subr.bf16.mxu0 0
    %835 = vmatpush1.bf16.msra.mxu0 0
    %836 = vmatprep.subr.bf16.mxu0 0
    %837 = vmatpush1.bf16.msra.mxu0 %v818
    %838 = vmatprep.subr.bf16.mxu0 0
    %839 = vmatpush2.bf16.msra.mxu0 0
    %840 = vmatprep.subr.bf16.mxu0 0
    %841 = vmatpush2.bf16.msra.mxu0 0
    %842 = vmatprep.subr.bf16.mxu0 0
    %843 = vmatpush2.bf16.msra.mxu0 0
    %844 = vmatprep.subr.bf16.mxu0 0
    %845 = vmatpush2.bf16.msra.mxu0 0
    %846 = vmatprep.subr.bf16.mxu0 0
    %847 = vmatpush2.bf16.msra.mxu0 0
    %848 = vmatprep.subr.bf16.mxu0 0
    %849 = vmatpush2.bf16.msra.mxu0 0
    %850 = vmatprep.subr.bf16.mxu0 0
    %851 = vmatpush2.bf16.msra.mxu0 0
    %852 = vmatprep.subr.bf16.mxu0 0
    %853 = vmatpush2.bf16.msra.mxu0 0
    %854 = vmatprep.mubr.bf16.mxu0 0
    %855 = vmatmul.mubr.bf16.gmra.mxu0 %v820
    %v856 = vpop.f32.mrf.mxu0
    %v857 = vadd.f32 0.0, %v856
    %v858 = vpop.f32.mrf.mxu0
    %v859 = vpop.f32.mrf.mxu0
    %v860 = vadd.f32 0.0, %v859
    %v861 = vpop.f32.mrf.mxu0
    %862 = vdwg.mxu0
    %v863 = vrcp.pop %v813
    %v864 = vrcp.pop %v816
    %v865 = vmul.f32 %v857, %v863
    %v866 = vmul.f32 %v860, %v864
    %v867 = vld [vmem:[%s8] sm:$0x1]
    %v869 = vlaneseq
    %v870 = vshrl.u32 %v869, 7
    %v871 = vsub.s32 0, %v870
    %v872 = vrot.slane %v867, %v871
    %v874 = vadd.f32 %v865, %v872
    %v875 = vadd.f32 %v866, %v872
    %876 = vst [vmem:[#allocation2] sm:$0xff] %v874
    %877 = vst [vmem:[#allocation2 + $0x8] sm:$0xff] %v875
    %s878 = sld [smem:[#allocation3]]
    %s879 = scalar_lea.vmem [#allocation2], %s878
    %v880 = vld [vmem:[%s879] sm:$0x1]
    %881 = vst [vmem:[#allocation10] sm:$0x1] %v880
    %s882 = sld [smem:[#allocation3 + $0x1]]
    %s883 = scalar_lea.vmem [#allocation2], %s882
    %v884 = vld [vmem:[%s883] sm:$0x1]
    %885 = vst [vmem:[#allocation10 + $0x1] sm:$0x1] %v884
    %s886 = sld [smem:[#allocation3 + $0x2]]
    %s887 = scalar_lea.vmem [#allocation2], %s886
    %v888 = vld [vmem:[%s887] sm:$0x1]
    %889 = vst [vmem:[#allocation10 + $0x2] sm:$0x1] %v888
    %s890 = sld [smem:[#allocation3 + $0x3]]
    %s891 = scalar_lea.vmem [#allocation2], %s890
    %v892 = vld [vmem:[%s891] sm:$0x1]
    %893 = vst [vmem:[#allocation10 + $0x3] sm:$0x1] %v892
    %s894 = sld [smem:[#allocation3 + $0x4]]
    %s895 = scalar_lea.vmem [#allocation2], %s894
    %v896 = vld [vmem:[%s895] sm:$0x1]
    %897 = vst [vmem:[#allocation10 + $0x4] sm:$0x1] %v896
    %s898 = sld [smem:[#allocation3 + $0x5]]
    %s899 = scalar_lea.vmem [#allocation2], %s898
    %v900 = vld [vmem:[%s899] sm:$0x1]
    %901 = vst [vmem:[#allocation10 + $0x5] sm:$0x1] %v900
    %s902 = sld [smem:[#allocation3 + $0x6]]
    %s903 = scalar_lea.vmem [#allocation2], %s902
    %v904 = vld [vmem:[%s903] sm:$0x1]
    %905 = vst [vmem:[#allocation10 + $0x6] sm:$0x1] %v904
    %s906 = sld [smem:[#allocation3 + $0x7]]
    %s907 = scalar_lea.vmem [#allocation2], %s906
    %v908 = vld [vmem:[%s907] sm:$0x1]
    %909 = vst [vmem:[#allocation10 + $0x7] sm:$0x1] %v908
    // Predicated region
    $region54: #{tpu_custom_call.1} parent=1 // pred_check
      _
    $region55: #{tpu_custom_call.1} parent=1 // pred_check_branch
      %911 = sbr.rel (0) target = $region57
    $region56: #{tpu_custom_call.1} parent=1 // pred_region
      %s913 = ssub.s32 128, 128
      %914 = vsyncadd [#allocation5], %s913
      %s916 = sshll.u32 [#allocation10], 4
      %s917 = int_to_ptr.vmem [resolvable:$true] %s916
      %919 = dma.vmem_to_hbm [thread:$0]  %s917, 128, %s10, [#allocation5]
    $region57: #{tpu_custom_call.1} parent=1 // pred_fallthru
      _
    // Predicated region
    $region58: #{tpu_custom_call.1} parent=1 // pred_check
      _
    $region59: #{tpu_custom_call.1} parent=1 // pred_check_branch
      %921 = sbr.rel (0) target = $region61
    $region60: #{tpu_custom_call.1} parent=1 // pred_region
      %922 = dma.done [#allocation5], 128
    $region61: #{tpu_custom_call.1} parent=1 // pred_fallthru
      _
    %923 = vsyncpa [#allocation4], 1
    %924 = vsyncpa [#allocation9], 1
    %925 = vsyncpa [#allocation5], 1
    %926 = vsyncpa [#allocation6], 1

</llo_original>
